<compile_context>
chip_gen: v6e
topology: v6e:2x2x1
jax: 0.10.0
libtpu: 0.0.40
codegen_flags: <defaults>
</compile_context>

<pallas_src>
import functools

import jax
import jax.numpy as jnp
from jax.experimental import pallas as pl
from jax.experimental.pallas import tpu as pltpu

_LANES_CHOICES = (1024, 512, 256, 128)   # widest lane slab that divides the word count
_SUBLANES = 8
_TARGET_BLOCK_BYTES = 2 * 1024 * 1024    # ~2 MiB/block; x4 buffers = 8 MiB < 16 MiB v5e scoped VMEM
_MIN_KERNEL_BYTES = 256 * 1024           # leaves smaller than this: pass through, no dispatch


def _copy_kernel(x_ref, o_ref):
    # Pure copy: the VMEM tile streamed in is streamed straight back out.
    o_ref[...] = x_ref[...]


def _pallas_copy_2d(x2d, tm, alias):
    rows, lanes = x2d.shape
    return pl.pallas_call(
        _copy_kernel,
        out_shape=jax.ShapeDtypeStruct((rows, lanes), x2d.dtype),
        grid_spec=pltpu.PrefetchScalarGridSpec(
            num_scalar_prefetch=0,
            grid=(pl.cdiv(rows, tm),),
            in_specs=[pl.BlockSpec((tm, lanes), lambda i: (i, 0))],
            out_specs=pl.BlockSpec((tm, lanes), lambda i: (i, 0)),
        ),
        input_output_aliases=({0: 0} if alias else {}),
        compiler_params=pltpu.CompilerParams(
            dimension_semantics=("parallel",)),
    )(x2d)


def _copy_impl(x, lanes, tm, alias):
    """Bitcast the leaf to lane-dense uint32 words, copy with Pallas, bitcast back.

    All reshapes/bitcasts here are metadata-only and fuse into the same jit as
    the pallas_call, so the only HBM traffic is the kernel's read + write.
    """
    shape, dtype = x.shape, x.dtype
    itemsize = jnp.dtype(dtype).itemsize
    flat = x.reshape(-1)

    # View raw bytes as 32-bit words.
    if itemsize == 4:
        words = jax.lax.bitcast_convert_type(flat, jnp.uint32)
    elif itemsize < 4:
        words = jax.lax.bitcast_convert_type(
            flat.reshape(-1, 4 // itemsize), jnp.uint32)
    else:  # itemsize == 8
        words = jax.lax.bitcast_convert_type(flat, jnp.uint32).reshape(-1)

    rows = words.shape[0] // lanes
    y2d = _pallas_copy_2d(words.reshape(rows, lanes), tm, alias)
    w = y2d.reshape(-1)

    # View back as the original dtype/shape.
    if itemsize == 4:
        out = jax.lax.bitcast_convert_type(w, dtype)
    elif itemsize < 4:
        out = jax.lax.bitcast_convert_type(w, dtype)   # adds trailing ratio dim
    else:  # itemsize == 8
        out = jax.lax.bitcast_convert_type(w.reshape(-1, 2), dtype)
    return out.reshape(shape)


@functools.partial(jax.jit, static_argnames=("lanes", "tm"))
def _identity_copy(x, *, lanes, tm):
    return _copy_impl(x, lanes, tm, alias=False)


@functools.partial(jax.jit, static_argnames=("lanes", "tm"), donate_argnums=(0,))
def _identity_copy_donated(x, *, lanes, tm):
    # Caller must not reuse the donated input buffer afterwards.
    return _copy_impl(x, lanes, tm, alias=True)


def _identity_array(x, donate=False):
    """Identity on a single leaf.  Large, nicely-shaped leaves go through the
    Pallas copy kernel; everything else is returned untouched (exact identity,
    zero data movement)."""
    if not hasattr(x, "dtype") or not hasattr(x, "shape"):
        return x
    size = 1
    for d in x.shape:
        size *= d
    if size == 0:
        return x
    dtype = jnp.dtype(x.dtype)
    if dtype == jnp.bool_:
        return x                                    # awkward packing; pass through
    nbytes = size * dtype.itemsize
    if nbytes < _MIN_KERNEL_BYTES or nbytes % 4 != 0:
        return x                                    # too small / ragged bytes: pass through
    words = nbytes // 4
    lanes = next((l for l in _LANES_CHOICES if words % l == 0), None)
    if lanes is None:
        return x                                    # ragged lane tail: pass through, no pad

    rows = words // lanes
    # Row tile: ~2 MiB blocks, multiple of 8 sublanes, and at least 2 grid
    # blocks so v7x's two TensorCores both get work.
    tm_cap = max(_SUBLANES,
                 (_TARGET_BLOCK_BYTES // (lanes * 4)) // _SUBLANES * _SUBLANES)
    half_rows = max(_SUBLANES, (-(-rows // 2)) // _SUBLANES * _SUBLANES)
    tm = min(tm_cap, half_rows)

    fn = _identity_copy_donated if donate else _identity_copy
    return fn(x, lanes=lanes, tm=tm)


def identity_forward(data, donate_buffers=False):
    """Pallas equivalent of Identity.forward(data) for an AtomicDataDict-like
    pytree.  Set donate_buffers=True only if the caller will not touch the
    input arrays again."""
    # TODO(synk): non-array metadata entries of AtomicDataDict (if any) have no
    # kernel equivalent; they are passed through unchanged.
    return jax.tree_util.tree_map(
        lambda x: _identity_array(x, donate=donate_buffers), data)


if __name__ == "__main__":
    key = jax.random.PRNGKey(0)
    k1, k2, k3, k4, k5 = jax.random.split(key, 5)

    # AtomicDataDict-style input: tiny metadata leaves (pass-through) plus two
    # larger feature leaves that exercise the kernel path (f32 and bf16).
    data = {
        "pos": jax.random.normal(k1, (8, 3), dtype=jnp.float32),
        "node_feats": jax.random.normal(k2, (2, 4, 16), dtype=jnp.float32),
        "atom_types": jnp.arange(8, dtype=jnp.int32),
        "edge_feats": jax.random.normal(k3, (1024, 128), dtype=jnp.float32),     # 512 KiB -> kernel
        "env_feats": jax.random.normal(k4, (512, 256), dtype=jnp.bfloat16),      # 256 KiB -> kernel
    }
    del k5

    out = identity_forward(data)
    out = jax.block_until_ready(out)

    for name in data:
        assert out[name].shape == data[name].shape, f"shape mismatch in {name}"
        assert out[name].dtype == data[name].dtype, f"dtype mismatch in {name}"
        assert jnp.array_equal(out[name], data[name]), f"value mismatch in {name}"

    # Sanity: the large leaves actually went through the Pallas copy kernel
    # (distinct output buffers), the small ones were passed straight through.
    assert out["edge_feats"] is not data["edge_feats"]
    assert out["env_feats"] is not data["env_feats"]
    assert out["pos"] is data["pos"]

    print("KERNEL_OK")
</pallas_src>

<mosaic_0001>
module attributes {stable_mosaic.version = 11 : i64} {
  func.func @_copy_kernel(%arg0: i32, %arg1: memref<64x1024xi32, #tpu.memory_space<vmem>>, %arg2: memref<64x1024xi32, #tpu.memory_space<vmem>>) attributes {dimension_semantics = [#tpu.dimension_semantics<parallel>], iteration_bounds = array<i64: 2>, scalar_prefetch = 0 : i64, scratch_operands = 0 : i64, tpu.core_type = #tpu.core_type<tc>, window_params = [{transform_indices = @transform_0, window_bounds = array<i64: 64, 1024>}, {transform_indices = @transform_1, window_bounds = array<i64: 64, 1024>}]} {
    %c0 = arith.constant 0 : index
    %c0_0 = arith.constant 0 : index
    %0 = vector.load %arg1[%c0, %c0_0] : memref<64x1024xi32, #tpu.memory_space<vmem>>, vector<64x1024xi32>
    %c0_1 = arith.constant 0 : index
    %c0_2 = arith.constant 0 : index
    %1 = vector.load %arg2[%c0_1, %c0_2] : memref<64x1024xi32, #tpu.memory_space<vmem>>, vector<64x1024xi32>
    tpu.vector_store %arg2[%c0_1, %c0_2], %0 {strides = array<i32>} : memref<64x1024xi32, #tpu.memory_space<vmem>>, vector<64x1024xi32>,
    return
  }
  func.func @transform_0(%arg0: i32) -> (i32, i32) {
    %c0_i32 = arith.constant 0 : i32
    %c0_i32_0 = arith.constant 0 : i32
    return %arg0, %c0_i32 : i32, i32
  }
  func.func @transform_1(%arg0: i32) -> (i32, i32) {
    %c0_i32 = arith.constant 0 : i32
    %c0_i32_0 = arith.constant 0 : i32
    return %arg0, %c0_i32 : i32, i32
  }
}

</mosaic_0001>

<llo_original>
// kernel: _identity_copy.1
$region0: #{_identity_copy.1}
  #allocation0 [shape = 'u32[]', space=smem, size = 0x4, offset = 0x4, fixed_abs, tag = 'smem constant byte address 0x4 - core index']
  #allocation1 [shape = 'u32[144,128]{1,0:T(1,128)}', space=vmem, size = 0x12000, scoped, tag = 'internal scratch']
  %s0 = inlined_call_operand.vmem [shape: u32[128,1024], index: 0, kind: input, shape index: {}]
  %s1 = inlined_call_operand.vmem [shape: u32[128,1024], index: 1, kind: output, shape index: {}]
  %s2 = sld [smem:[#allocation0]]
  $region37: #{_identity_copy.1} parent=0
    _
  %s4 = ssub.s32 1, %s2
  %s5 = scalar_select 0, %s4, %s2
  loop: start=0, step=1, limit=4
  $region2: #{_identity_copy.1} parent=0 // loop_pre_header
    _
  $region3: #{_identity_copy.1} parent=0 // loop_header
    %s7 = sphi 0, %s11
    %p8 = scmp.ge.s32.totalorder %s7, 4
    %s17 = sphi 0, %s19
    %s20 = sphi 0, %s17
    %s21 = sphi 0, %s20
    %s37 = sphi 0, %s21
    %s43 = sphi 0, %s45
    %s46 = sphi 0, %s43
    %s47 = sphi 0, %s46
    %s63 = sphi 0, %s47
  $region4: #{_identity_copy.1} parent=0 // loop_header_branch
    %10 = sbr.rel (%p8) target = $region8
  $region5: #{_identity_copy.1} parent=0 // loop_body
    %s12 = ssub.s32 %s7, 1
    %s13 = ssub.s32 %s7, 2
    %s14 = sadd.s32 %s7, 1
    %s15 = ssub.s32 %s7, %s14
    %p16 = scmp.eq.s32.totalorder %s15, 0
    %s18 = sadd.s32 %s17, 1
    %s19 = scalar_select %p16, %s17, %s18
    %p22 = pneg %p16
    %p23 = scmp.eq.s32.totalorder %s7, 1
    %p24 = por %p22, %p23
    %p25 = scmp.ne.s32.totalorder %s17, %s20
    %p26 = scmp.eq.s32.totalorder %s7, 0
    %p27 = por %p25, %p26
    %p28 = scmp.ne.s32.totalorder %s17, %s20
    %p29 = scmp.eq.s32.totalorder %s12, 1
    %p30 = por %p28, %p29
    %p31 = scmp.ne.s32.totalorder %s20, %s21
    %p32 = scmp.eq.s32.totalorder %s12, 0
    %p33 = por %p31, %p32
    %p34 = scmp.ne.s32.totalorder %s20, %s21
    %p35 = scmp.eq.s32.totalorder %s13, 1
    %p36 = por %p34, %p35
    %p38 = scmp.ne.s32.totalorder %s21, %s37
    %p39 = scmp.eq.s32.totalorder %s13, 0
    %p40 = por %p38, %p39
    %s41 = ssub.s32 %s7, %s14
    %p42 = scmp.eq.s32.totalorder %s41, 0
    %s44 = sadd.s32 %s43, 1
    %s45 = scalar_select %p42, %s43, %s44
    %p48 = pneg %p42
    %p49 = scmp.eq.s32.totalorder %s7, 1
    %p50 = por %p48, %p49
    %p51 = scmp.ne.s32.totalorder %s43, %s46
    %p52 = scmp.eq.s32.totalorder %s7, 0
    %p53 = por %p51, %p52
    %p54 = scmp.ne.s32.totalorder %s43, %s46
    %p55 = scmp.eq.s32.totalorder %s12, 1
    %p56 = por %p54, %p55
    %p57 = scmp.ne.s32.totalorder %s46, %s47
    %p58 = scmp.eq.s32.totalorder %s12, 0
    %p59 = por %p57, %p58
    %p60 = scmp.ne.s32.totalorder %s46, %s47
    %p61 = scmp.eq.s32.totalorder %s13, 1
    %p62 = por %p60, %p61
    %p64 = scmp.ne.s32.totalorder %s47, %s63
    %p65 = scmp.eq.s32.totalorder %s13, 0
    %p66 = por %p64, %p65
    %p67 = scmp.le.s32.totalorder 1, %s7
    %p68 = scmp.lt.s32.totalorder %s7, 3
    %p69 = pnand %p67, %p68
    %p70 = pneg %p69
    // Predicated region
    $region9: #{_identity_copy.1} parent=5 // pred_check
      _
    $region10: #{_identity_copy.1} parent=5 // pred_check_branch
      %72 = sbr.rel (%p69) target = $region12
    $region11: #{_identity_copy.1} parent=5 // pred_region
      %s73 = ssub.s32 %s7, 1
    $region12: #{_identity_copy.1} parent=5 // pred_fallthru
      _
    %p74 = scmp.lt.s32.totalorder %s7, 2
    // Predicated region
    $region13: #{_identity_copy.1} parent=5 // pred_check
      %p75 = pneg %p74
    $region14: #{_identity_copy.1} parent=5 // pred_check_branch
      %77 = sbr.rel (%p75) target = $region16
    $region15: #{_identity_copy.1} parent=5 // pred_region
      // Predicated region
      $region17: #{_identity_copy.1} parent=15 // pred_check
        %p78 = pneg %p27
      $region18: #{_identity_copy.1} parent=15 // pred_check_branch
        %80 = sbr.rel (%p78) target = $region20
      $region19: #{_identity_copy.1} parent=15 // pred_region
        %s81 = smul.u32 8, %s7
        %p82 = scmp.lt.s32.totalorder %s81, 15
        %s83 = scalar_select %p82, %s81, 15
        %s84 = smul.addr %s83, 8
        %s85 = smul.addr %s84, 8
        %s86 = scalar_lea.vmem %s0, %s85
        %s87 = smul.u32 8, %s7
      $region20: #{_identity_copy.1} parent=15 // pred_fallthru
        _
    $region16: #{_identity_copy.1} parent=5 // pred_fallthru
      _
    %p88 = scmp.le.s32.totalorder 1, %s7
    %p89 = scmp.lt.s32.totalorder %s7, 3
    %p90 = pnand %p88, %p89
    %p91 = pneg %p90
    // Predicated region
    $region21: #{_identity_copy.1} parent=5 // pred_check
      _
    $region22: #{_identity_copy.1} parent=5 // pred_check_branch
      %93 = sbr.rel (%p90) target = $region24
    $region23: #{_identity_copy.1} parent=5 // pred_region
      %s94 = ssub.s32 %s7, 1
      %s95 = smul.u32 8, %s12
      %p96 = scmp.lt.s32.totalorder %s95, 15
      %s97 = scalar_select %p96, %s95, 15
      %s98 = smul.addr %s97, 8
      %s99 = smul.addr %s98, 8
      %s100 = scalar_lea.vmem %s0, %s99
      %p101 = pneg %p33
      %p102 = pneg %p30
      %p103 = pneg %p59
      %p104 = pneg %p56
      %s105 = smul.u32 8, %s12
      %p106 = scmp.lt.s32.totalorder %s105, 15
      %s107 = scalar_select %p106, %s105, 15
      %s108 = smul.addr %s107, 8
      %s109 = smul.addr %s108, 8
      %s110 = scalar_lea.vmem %s1, %s109
      %s111 = smul.u32 8, %s12
      %p112 = scmp.lt.s32.totalorder %s111, 15
      %s113 = scalar_select %p112, %s111, 15
      %s114 = smul.addr %s113, 8
      %s115 = smul.addr %s114, 8
      %s116 = scalar_lea.vmem %s0, %s115
      %s117 = smul.u32 8, %s12
      %s118 = smul.u32 8, %s12
      %p119 = scmp.lt.s32.totalorder %s118, 15
      %s120 = scalar_select %p119, %s118, 15
      %s121 = smul.addr %s120, 8
      %s122 = smul.addr %s121, 8
      %s123 = scalar_lea.vmem %s1, %s122
      %s124 = smul.u32 8, %s12
      %v125 = vld [vmem:[%s116] sm:$0xff]
      %v126 = vld [vmem:[%s116 + $0x8] sm:$0xff]
      %v127 = vld [vmem:[%s116 + $0x10] sm:$0xff]
      %v128 = vld [vmem:[%s116 + $0x18] sm:$0xff]
      %v129 = vld [vmem:[%s116 + $0x20] sm:$0xff]
      %v130 = vld [vmem:[%s116 + $0x28] sm:$0xff]
      %v131 = vld [vmem:[%s116 + $0x30] sm:$0xff]
      %v132 = vld [vmem:[%s116 + $0x38] sm:$0xff]
      %v133 = vld [vmem:[%s116 + $0x40] sm:$0xff]
      %v134 = vld [vmem:[%s116 + $0x48] sm:$0xff]
      %v135 = vld [vmem:[%s116 + $0x50] sm:$0xff]
      %v136 = vld [vmem:[%s116 + $0x58] sm:$0xff]
      %v137 = vld [vmem:[%s116 + $0x60] sm:$0xff]
      %v138 = vld [vmem:[%s116 + $0x68] sm:$0xff]
      %v139 = vld [vmem:[%s116 + $0x70] sm:$0xff]
      %v140 = vld [vmem:[%s116 + $0x78] sm:$0xff]
      %v141 = vld [vmem:[%s116 + $0x80] sm:$0xff]
      %v142 = vld [vmem:[%s116 + $0x88] sm:$0xff]
      %v143 = vld [vmem:[%s116 + $0x90] sm:$0xff]
      %v144 = vld [vmem:[%s116 + $0x98] sm:$0xff]
      %v145 = vld [vmem:[%s116 + $0xa0] sm:$0xff]
      %v146 = vld [vmem:[%s116 + $0xa8] sm:$0xff]
      %v147 = vld [vmem:[%s116 + $0xb0] sm:$0xff]
      %v148 = vld [vmem:[%s116 + $0xb8] sm:$0xff]
      %v149 = vld [vmem:[%s116 + $0xc0] sm:$0xff]
      %v150 = vld [vmem:[%s116 + $0xc8] sm:$0xff]
      %v151 = vld [vmem:[%s116 + $0xd0] sm:$0xff]
      %v152 = vld [vmem:[%s116 + $0xd8] sm:$0xff]
      %v153 = vld [vmem:[%s116 + $0xe0] sm:$0xff]
      %v154 = vld [vmem:[%s116 + $0xe8] sm:$0xff]
      %v155 = vld [vmem:[%s116 + $0xf0] sm:$0xff]
      %v156 = vld [vmem:[%s116 + $0xf8] sm:$0xff]
      %v157 = vld [vmem:[%s116 + $0x100] sm:$0xff]
      %v158 = vld [vmem:[%s116 + $0x108] sm:$0xff]
      %v159 = vld [vmem:[%s116 + $0x110] sm:$0xff]
      %v160 = vld [vmem:[%s116 + $0x118] sm:$0xff]
      %v161 = vld [vmem:[%s116 + $0x120] sm:$0xff]
      %v162 = vld [vmem:[%s116 + $0x128] sm:$0xff]
      %v163 = vld [vmem:[%s116 + $0x130] sm:$0xff]
      %v164 = vld [vmem:[%s116 + $0x138] sm:$0xff]
      %v165 = vld [vmem:[%s116 + $0x140] sm:$0xff]
      %v166 = vld [vmem:[%s116 + $0x148] sm:$0xff]
      %v167 = vld [vmem:[%s116 + $0x150] sm:$0xff]
      %v168 = vld [vmem:[%s116 + $0x158] sm:$0xff]
      %v169 = vld [vmem:[%s116 + $0x160] sm:$0xff]
      %v170 = vld [vmem:[%s116 + $0x168] sm:$0xff]
      %v171 = vld [vmem:[%s116 + $0x170] sm:$0xff]
      %v172 = vld [vmem:[%s116 + $0x178] sm:$0xff]
      %v173 = vld [vmem:[%s116 + $0x180] sm:$0xff]
      %v174 = vld [vmem:[%s116 + $0x188] sm:$0xff]
      %v175 = vld [vmem:[%s116 + $0x190] sm:$0xff]
      %v176 = vld [vmem:[%s116 + $0x198] sm:$0xff]
      %v177 = vld [vmem:[%s116 + $0x1a0] sm:$0xff]
      %v178 = vld [vmem:[%s116 + $0x1a8] sm:$0xff]
      %v179 = vld [vmem:[%s116 + $0x1b0] sm:$0xff]
      %v180 = vld [vmem:[%s116 + $0x1b8] sm:$0xff]
      %v181 = vld [vmem:[%s116 + $0x1c0] sm:$0xff]
      %v182 = vld [vmem:[%s116 + $0x1c8] sm:$0xff]
      %v183 = vld [vmem:[%s116 + $0x1d0] sm:$0xff]
      %v184 = vld [vmem:[%s116 + $0x1d8] sm:$0xff]
      %v185 = vld [vmem:[%s116 + $0x1e0] sm:$0xff]
      %v186 = vld [vmem:[%s116 + $0x1e8] sm:$0xff]
      %v187 = vld [vmem:[%s116 + $0x1f0] sm:$0xff]
      %v188 = vld [vmem:[%s116 + $0x1f8] sm:$0xff]
      %189 = vst [vmem:[%s123] sm:$0xff] %v125
      %190 = vst [vmem:[%s123 + $0x8] sm:$0xff] %v126
      %191 = vst [vmem:[%s123 + $0x10] sm:$0xff] %v127
      %192 = vst [vmem:[%s123 + $0x18] sm:$0xff] %v128
      %193 = vst [vmem:[%s123 + $0x20] sm:$0xff] %v129
      %194 = vst [vmem:[%s123 + $0x28] sm:$0xff] %v130
      %195 = vst [vmem:[%s123 + $0x30] sm:$0xff] %v131
      %196 = vst [vmem:[%s123 + $0x38] sm:$0xff] %v132
      %197 = vst [vmem:[%s123 + $0x40] sm:$0xff] %v133
      %198 = vst [vmem:[%s123 + $0x48] sm:$0xff] %v134
      %199 = vst [vmem:[%s123 + $0x50] sm:$0xff] %v135
      %200 = vst [vmem:[%s123 + $0x58] sm:$0xff] %v136
      %201 = vst [vmem:[%s123 + $0x60] sm:$0xff] %v137
      %202 = vst [vmem:[%s123 + $0x68] sm:$0xff] %v138
      %203 = vst [vmem:[%s123 + $0x70] sm:$0xff] %v139
      %204 = vst [vmem:[%s123 + $0x78] sm:$0xff] %v140
      %205 = vst [vmem:[%s123 + $0x80] sm:$0xff] %v141
      %206 = vst [vmem:[%s123 + $0x88] sm:$0xff] %v142
      %207 = vst [vmem:[%s123 + $0x90] sm:$0xff] %v143
      %208 = vst [vmem:[%s123 + $0x98] sm:$0xff] %v144
      %209 = vst [vmem:[%s123 + $0xa0] sm:$0xff] %v145
      %210 = vst [vmem:[%s123 + $0xa8] sm:$0xff] %v146
      %211 = vst [vmem:[%s123 + $0xb0] sm:$0xff] %v147
      %212 = vst [vmem:[%s123 + $0xb8] sm:$0xff] %v148
      %213 = vst [vmem:[%s123 + $0xc0] sm:$0xff] %v149
      %214 = vst [vmem:[%s123 + $0xc8] sm:$0xff] %v150
      %215 = vst [vmem:[%s123 + $0xd0] sm:$0xff] %v151
      %216 = vst [vmem:[%s123 + $0xd8] sm:$0xff] %v152
      %217 = vst [vmem:[%s123 + $0xe0] sm:$0xff] %v153
      %218 = vst [vmem:[%s123 + $0xe8] sm:$0xff] %v154
      %219 = vst [vmem:[%s123 + $0xf0] sm:$0xff] %v155
      %220 = vst [vmem:[%s123 + $0xf8] sm:$0xff] %v156
      %221 = vst [vmem:[%s123 + $0x100] sm:$0xff] %v157
      %222 = vst [vmem:[%s123 + $0x108] sm:$0xff] %v158
      %223 = vst [vmem:[%s123 + $0x110] sm:$0xff] %v159
      %224 = vst [vmem:[%s123 + $0x118] sm:$0xff] %v160
      %225 = vst [vmem:[%s123 + $0x120] sm:$0xff] %v161
      %226 = vst [vmem:[%s123 + $0x128] sm:$0xff] %v162
      %227 = vst [vmem:[%s123 + $0x130] sm:$0xff] %v163
      %228 = vst [vmem:[%s123 + $0x138] sm:$0xff] %v164
      %229 = vst [vmem:[%s123 + $0x140] sm:$0xff] %v165
      %230 = vst [vmem:[%s123 + $0x148] sm:$0xff] %v166
      %231 = vst [vmem:[%s123 + $0x150] sm:$0xff] %v167
      %232 = vst [vmem:[%s123 + $0x158] sm:$0xff] %v168
      %233 = vst [vmem:[%s123 + $0x160] sm:$0xff] %v169
      %234 = vst [vmem:[%s123 + $0x168] sm:$0xff] %v170
      %235 = vst [vmem:[%s123 + $0x170] sm:$0xff] %v171
      %236 = vst [vmem:[%s123 + $0x178] sm:$0xff] %v172
      %237 = vst [vmem:[%s123 + $0x180] sm:$0xff] %v173
      %238 = vst [vmem:[%s123 + $0x188] sm:$0xff] %v174
      %239 = vst [vmem:[%s123 + $0x190] sm:$0xff] %v175
      %240 = vst [vmem:[%s123 + $0x198] sm:$0xff] %v176
      %241 = vst [vmem:[%s123 + $0x1a0] sm:$0xff] %v177
      %242 = vst [vmem:[%s123 + $0x1a8] sm:$0xff] %v178
      %243 = vst [vmem:[%s123 + $0x1b0] sm:$0xff] %v179
      %244 = vst [vmem:[%s123 + $0x1b8] sm:$0xff] %v180
      %245 = vst [vmem:[%s123 + $0x1c0] sm:$0xff] %v181
      %246 = vst [vmem:[%s123 + $0x1c8] sm:$0xff] %v182
      %247 = vst [vmem:[%s123 + $0x1d0] sm:$0xff] %v183
      %248 = vst [vmem:[%s123 + $0x1d8] sm:$0xff] %v184
      %249 = vst [vmem:[%s123 + $0x1e0] sm:$0xff] %v185
      %250 = vst [vmem:[%s123 + $0x1e8] sm:$0xff] %v186
      %251 = vst [vmem:[%s123 + $0x1f0] sm:$0xff] %v187
      %252 = vst [vmem:[%s123 + $0x1f8] sm:$0xff] %v188
      %s253 = smul.u32 8, %s12
      %p254 = scmp.lt.s32.totalorder %s253, 15
      %s255 = scalar_select %p254, %s253, 15
      %s256 = smul.addr %s255, 8
      %s257 = smul.addr %s256, 8
      %s258 = scalar_lea.vmem %s1, %s257
      // Predicated region
      $region25: #{_identity_copy.1} parent=23 // pred_check
        %p259 = pneg %p56
      $region26: #{_identity_copy.1} parent=23 // pred_check_branch
        %261 = sbr.rel (%p259) target = $region28
      $region27: #{_identity_copy.1} parent=23 // pred_region
        %s262 = smul.u32 8, %s12
      $region28: #{_identity_copy.1} parent=23 // pred_fallthru
        _
    $region24: #{_identity_copy.1} parent=5 // pred_fallthru
      _
    %p263 = scmp.le.s32.totalorder 2, %s7
    // Predicated region
    $region29: #{_identity_copy.1} parent=5 // pred_check
      %p264 = pneg %p263
    $region30: #{_identity_copy.1} parent=5 // pred_check_branch
      %266 = sbr.rel (%p264) target = $region32
    $region31: #{_identity_copy.1} parent=5 // pred_region
      %s267 = ssub.s32 %s7, 2
      // Predicated region
      $region33: #{_identity_copy.1} parent=31 // pred_check
        %p268 = pneg %p62
      $region34: #{_identity_copy.1} parent=31 // pred_check_branch
        %270 = sbr.rel (%p268) target = $region36
      $region35: #{_identity_copy.1} parent=31 // pred_region
        %s271 = smul.u32 8, %s13
        %p272 = scmp.lt.s32.totalorder %s271, 15
        %s273 = scalar_select %p272, %s271, 15
        %s274 = smul.addr %s273, 8
        %s275 = smul.addr %s274, 8
        %s276 = scalar_lea.vmem %s1, %s275
      $region36: #{_identity_copy.1} parent=31 // pred_fallthru
        _
    $region32: #{_identity_copy.1} parent=5 // pred_fallthru
      _
  $region6: #{_identity_copy.1} parent=0 // loop_footer
    %s11 = sadd.s32 1, %s7
  $region7: #{_identity_copy.1} parent=0 // loop_footer_branch
    %6 = sbr.rel target = $region3
  $region8: #{_identity_copy.1} parent=0 // loop_exit
    _

</llo_original>
